<compile_context>
chip_gen: v7x
topology: tpu7x:2x2x1
jax: 0.10.0
libtpu: 0.0.40
codegen_flags: <defaults>
</compile_context>

<pallas_src>
import functools
import math

import jax
import jax.numpy as jnp
from jax import lax
from jax.experimental import pallas as pl
from jax.experimental.pallas import tpu as pltpu

ACT_DTYPE = jnp.bfloat16          # MXU operand / inter-kernel activation dtype (HBM)
LN_EPS = 1e-12                    # HF BERT layer_norm_eps
VMEM_LIMIT = 48 * 1024 * 1024     # above default scoped limit, below v7x 64 MiB physical


# --------------------------------------------------------------------------------------
# Tiling helpers
# --------------------------------------------------------------------------------------
def _round_up(x, m):
    return (x + m - 1) // m * m


def _row_tiles(rows):
    """Row tile + padded rows; avoids host-side pad/slice when rows % 8 == 0."""
    if rows % 8 == 0:
        for t in (512, 256, 128, 64, 32, 16, 8):
            if t <= rows and rows % t == 0:
                return t, rows
    tile = min(512, _round_up(rows, 8))
    return tile, _round_up(rows, tile)


def _col_tile(dout):
    """Dout tile: keeps weight blocks VMEM-friendly at realistic widths (e.g. I=3072)."""
    if dout <= 1024:
        return dout
    for t in (1024, 768, 512, 384, 256, 128):
        if dout % t == 0:
            return t
    return dout


def _lstm_batch_block(batch):
    # Two batch blocks -> one per TensorCore on v7x, when the block stays 8-aligned.
    if batch >= 16 and batch % 16 == 0:
        return batch // 2
    return batch


def _lstm_time_chunk(seq):
    for t in (64, 32, 16, 8):
        if seq % t == 0:
            return t
    return seq


# --------------------------------------------------------------------------------------
# Kernels
# --------------------------------------------------------------------------------------
def dense_kernel(x_ref, w_ref, b_ref, o_ref, *, activation):
    acc = jnp.dot(x_ref[...], w_ref[...], preferred_element_type=jnp.float32)
    acc = acc + b_ref[...].astype(jnp.float32)
    if activation == "gelu":
        # tanh-approximate gelu (used consistently in kernel and reference).
        acc = jax.nn.gelu(acc, approximate=True)
    o_ref[...] = acc.astype(o_ref.dtype)


def dense_ln_kernel(x_ref, w_ref, b_ref, r_ref, g_ref, bt_ref, o_ref, *, eps):
    """Dense projection + residual add + LayerNorm fused; Dout == full feature dim."""
    acc = jnp.dot(x_ref[...], w_ref[...], preferred_element_type=jnp.float32)
    acc = acc + b_ref[...].astype(jnp.float32) + r_ref[...].astype(jnp.float32)
    mu = jnp.mean(acc, axis=-1, keepdims=True)
    var = jnp.mean(jnp.square(acc - mu), axis=-1, keepdims=True)
    y = (acc - mu) * lax.rsqrt(var + eps)
    o_ref[...] = (y * g_ref[...].astype(jnp.float32)
                  + bt_ref[...].astype(jnp.float32)).astype(o_ref.dtype)


def ln_kernel(x_ref, g_ref, b_ref, o_ref, *, eps):
    x = x_ref[...].astype(jnp.float32)
    mu = jnp.mean(x, axis=-1, keepdims=True)
    var = jnp.mean(jnp.square(x - mu), axis=-1, keepdims=True)
    y = (x - mu) * lax.rsqrt(var + eps)
    o_ref[...] = (y * g_ref[...].astype(jnp.float32)
                  + b_ref[...].astype(jnp.float32)).astype(o_ref.dtype)


def attn_kernel(qkv_ref, o_ref, *, num_heads, hidden, scale):
    """One batch element per grid step: consume fused (S, 3H) QKV slab, emit (S, H)."""
    qkv = qkv_ref[0]                                  # (S, 3H), bf16
    dh = hidden // num_heads
    outs = []
    for h in range(num_heads):                        # static lane slices; no transposes
        q = qkv[:, h * dh:(h + 1) * dh]
        k = qkv[:, hidden + h * dh: hidden + (h + 1) * dh]
        v = qkv[:, 2 * hidden + h * dh: 2 * hidden + (h + 1) * dh]
        # Contract over dh without materializing k.T (MXU consumes K untransposed).
        s = lax.dot_general(q, k, (((1,), (1,)), ((), ())),
                            preferred_element_type=jnp.float32) * scale   # (S, S) f32
        m = jnp.max(s, axis=-1, keepdims=True)
        p = jnp.exp(s - m)
        p = p * pl.reciprocal(jnp.sum(p, axis=-1, keepdims=True), approx=True)
        outs.append(jnp.dot(p.astype(v.dtype), v, preferred_element_type=jnp.float32))
    # Single lane-dense (S, H) store instead of per-head masked 64-lane stores.
    o_ref[0] = jnp.concatenate(outs, axis=-1).astype(o_ref.dtype)


def lstm_kernel(gx_ref, whh_ref, o_ref, h_sc, c_sc, *, hidden):
    """Recurrence only: gates_x = x@W_ih + b precomputed; grid = (batch_blk, time_chunk)."""
    @pl.when(pl.program_id(1) == 0)                    # new batch block -> reset state
    def _():
        h_sc[...] = jnp.zeros_like(h_sc)
        c_sc[...] = jnp.zeros_like(c_sc)

    H = hidden
    T = gx_ref.shape[0]
    whh = whh_ref[...]                                 # (H, 4H) bf16, VMEM resident

    def step(t, carry):
        h, c = carry
        gates = (gx_ref[t].astype(jnp.float32)
                 + jnp.dot(h.astype(whh.dtype), whh,
                           preferred_element_type=jnp.float32))          # (bb, 4H)
        i = jax.nn.sigmoid(gates[:, 0:H])
        f = jax.nn.sigmoid(gates[:, H:2 * H])
        g = jnp.tanh(gates[:, 2 * H:3 * H])
        o = jax.nn.sigmoid(gates[:, 3 * H:4 * H])
        c = f * c + i * g
        h = o * jnp.tanh(c)
        o_ref[t] = h.astype(o_ref.dtype)
        return (h, c)

    h, c = lax.fori_loop(0, T, step, (h_sc[...], c_sc[...]), unroll=(T <= 16))
    h_sc[...] = h
    c_sc[...] = c


# --------------------------------------------------------------------------------------
# Pallas wrappers
# --------------------------------------------------------------------------------------
def pallas_dense(x, w, b, activation=None, out_dtype=None):
    R, Din = x.shape
    Dout = w.shape[1]
    out_dtype = out_dtype or x.dtype
    tile_r, R_pad = _row_tiles(R)
    if R_pad != R:
        x = jnp.pad(x, ((0, R_pad - R), (0, 0)))
    tile_n = _col_tile(Dout)
    out = pl.pallas_call(
        functools.partial(dense_kernel, activation=activation),
        out_shape=jax.ShapeDtypeStruct((R_pad, Dout), out_dtype),
        grid_spec=pltpu.PrefetchScalarGridSpec(
            num_scalar_prefetch=0, grid=(R_pad // tile_r, Dout // tile_n),
            in_specs=[pl.BlockSpec((tile_r, Din), lambda i, j: (i, 0)),
                      pl.BlockSpec((Din, tile_n), lambda i, j: (0, j)),
                      pl.BlockSpec((1, tile_n), lambda i, j: (0, j))],
            out_specs=pl.BlockSpec((tile_r, tile_n), lambda i, j: (i, j))),
        compiler_params=pltpu.CompilerParams(
            dimension_semantics=("parallel", "parallel"),
            vmem_limit_bytes=VMEM_LIMIT),
    )(x, w, b.reshape(1, Dout))
    return out if R_pad == R else out[:R]


def pallas_dense_ln(x, w, b, residual, gamma, beta, out_dtype=None, eps=LN_EPS):
    """Dense + residual + LayerNorm fused (Dout == hidden; no Dout tiling)."""
    R, Din = x.shape
    Dout = w.shape[1]
    out_dtype = out_dtype or x.dtype
    tile_r, R_pad = _row_tiles(R)
    if R_pad != R:
        x = jnp.pad(x, ((0, R_pad - R), (0, 0)))
        residual = jnp.pad(residual, ((0, R_pad - R), (0, 0)))
    out = pl.pallas_call(
        functools.partial(dense_ln_kernel, eps=eps),
        out_shape=jax.ShapeDtypeStruct((R_pad, Dout), out_dtype),
        grid_spec=pltpu.PrefetchScalarGridSpec(
            num_scalar_prefetch=0, grid=(R_pad // tile_r,),
            in_specs=[pl.BlockSpec((tile_r, Din), lambda i: (i, 0)),
                      pl.BlockSpec((Din, Dout), lambda i: (0, 0)),
                      pl.BlockSpec((1, Dout), lambda i: (0, 0)),
                      pl.BlockSpec((tile_r, Dout), lambda i: (i, 0)),
                      pl.BlockSpec((1, Dout), lambda i: (0, 0)),
                      pl.BlockSpec((1, Dout), lambda i: (0, 0))],
            out_specs=pl.BlockSpec((tile_r, Dout), lambda i: (i, 0))),
        compiler_params=pltpu.CompilerParams(
            dimension_semantics=("parallel",), vmem_limit_bytes=VMEM_LIMIT),
    )(x, w, b.reshape(1, Dout), residual, gamma.reshape(1, Dout), beta.reshape(1, Dout))
    return out if R_pad == R else out[:R]


def pallas_layernorm(x, gamma, beta, out_dtype=None, eps=LN_EPS):
    R, H = x.shape
    out_dtype = out_dtype or x.dtype
    tile, R_pad = _row_tiles(R)
    if R_pad != R:
        x = jnp.pad(x, ((0, R_pad - R), (0, 0)))
    out = pl.pallas_call(
        functools.partial(ln_kernel, eps=eps),
        out_shape=jax.ShapeDtypeStruct((R_pad, H), out_dtype),
        grid_spec=pltpu.PrefetchScalarGridSpec(
            num_scalar_prefetch=0, grid=(R_pad // tile,),
            in_specs=[pl.BlockSpec((tile, H), lambda i: (i, 0)),
                      pl.BlockSpec((1, H), lambda i: (0, 0)),
                      pl.BlockSpec((1, H), lambda i: (0, 0))],
            out_specs=pl.BlockSpec((tile, H), lambda i: (i, 0))),
        compiler_params=pltpu.CompilerParams(
            dimension_semantics=("parallel",), vmem_limit_bytes=VMEM_LIMIT),
    )(x, gamma.reshape(1, H), beta.reshape(1, H))
    return out if R_pad == R else out[:R]


def pallas_attention(qkv, num_heads, hidden, out_dtype):
    """qkv: (B, S, 3H) fused projection output; returns (B, S, H). No wrapper transposes."""
    B, S, threeH = qkv.shape
    dh = hidden // num_heads
    return pl.pallas_call(
        functools.partial(attn_kernel, num_heads=num_heads, hidden=hidden,
                          scale=1.0 / math.sqrt(dh)),
        out_shape=jax.ShapeDtypeStruct((B, S, hidden), out_dtype),
        grid_spec=pltpu.PrefetchScalarGridSpec(
            num_scalar_prefetch=0, grid=(B,),
            in_specs=[pl.BlockSpec((1, S, threeH), lambda b: (b, 0, 0))],
            out_specs=pl.BlockSpec((1, S, hidden), lambda b: (b, 0, 0))),
        compiler_params=pltpu.CompilerParams(
            dimension_semantics=("parallel",), vmem_limit_bytes=VMEM_LIMIT),
    )(qkv)


def pallas_lstm(x, w_ih, w_hh, b_ih, b_hh, out_dtype=jnp.float32):
    """x: (B, S, H) bf16; PyTorch LSTM weights w_ih/w_hh: (4H, H) bf16, biases f32."""
    B, S, H = x.shape
    # Hoist the time-independent input projection into one fully parallel dense.
    gates_x = pallas_dense(x.reshape(B * S, H), jnp.transpose(w_ih),
                           (b_ih + b_hh).astype(jnp.float32),
                           out_dtype=jnp.float32)                         # (B*S, 4H) f32
    gx = jnp.transpose(gates_x.reshape(B, S, 4 * H), (1, 0, 2))           # (S, B, 4H)
    whh = jnp.transpose(w_hh)                                             # (H, 4H) bf16
    bb = _lstm_batch_block(B)
    T = _lstm_time_chunk(S)
    out = pl.pallas_call(
        functools.partial(lstm_kernel, hidden=H),
        out_shape=jax.ShapeDtypeStruct((S, B, H), out_dtype),
        grid_spec=pltpu.PrefetchScalarGridSpec(
            num_scalar_prefetch=0, grid=(B // bb, S // T),
            in_specs=[pl.BlockSpec((T, bb, 4 * H), lambda b, s: (s, b, 0)),
                      pl.BlockSpec((H, 4 * H), lambda b, s: (0, 0))],
            out_specs=pl.BlockSpec((T, bb, H), lambda b, s: (s, b, 0)),
            scratch_shapes=[pltpu.VMEM((bb, H), jnp.float32),   # h carry
                            pltpu.VMEM((bb, H), jnp.float32)]), # c carry
        # Batch blocks are independent (parallel / 2-TC); time must stay sequential.
        compiler_params=pltpu.CompilerParams(
            dimension_semantics=("parallel", "arbitrary"),
            vmem_limit_bytes=VMEM_LIMIT),
    )(gx, whh)
    return jnp.transpose(out, (1, 0, 2))


# --------------------------------------------------------------------------------------
# BertLSTM forward
# --------------------------------------------------------------------------------------
def bert_lstm_forward(ids, params, cfg):
    B, S = ids.shape
    H, heads = cfg["hidden"], cfg["heads"]
    p = params

    # Embedding gather is index glue; sum stays f32, LayerNorm runs in Pallas -> bf16.
    emb = (jnp.take(p["word_emb"], ids, axis=0)
           + p["pos_emb"][:S][None, :, :]
           + p["type_emb"][0][None, None, :])
    x = pallas_layernorm(emb.reshape(B * S, H), p["emb_ln_g"], p["emb_ln_b"],
                         out_dtype=ACT_DTYPE)

    for layer in p["layers"]:
        # Fused Q|K|V projection: one (rows, H) @ (H, 3H) matmul; bf16 operands.
        qkv = pallas_dense(x, layer["wqkv"], layer["bqkv"])
        attn = pallas_attention(qkv.reshape(B, S, 3 * H), heads, H, ACT_DTYPE)
        # Attention output projection + residual + LayerNorm fused in one kernel.
        x = pallas_dense_ln(attn.reshape(B * S, H), layer["wo"], layer["bo"],
                            residual=x, gamma=layer["ln1_g"], beta=layer["ln1_b"])
        ffn = pallas_dense(x, layer["wi"], layer["bi"], activation="gelu")
        # FFN down projection + residual + LayerNorm fused.
        x = pallas_dense_ln(ffn, layer["wo2"], layer["bo2"],
                            residual=x, gamma=layer["ln2_g"], beta=layer["ln2_b"])

    hidden = x.reshape(B, S, H)                       # == bert(x)[0], bf16
    lstm = p["lstm"]
    return pallas_lstm(hidden, lstm["w_ih"], lstm["w_hh"], lstm["b_ih"], lstm["b_hh"])


# --------------------------------------------------------------------------------------
# Pure-JAX reference (same math; mirrors the kernel's bf16 storage boundaries)
# --------------------------------------------------------------------------------------
def _ln_ref(x, g, b, eps=LN_EPS):
    mu = jnp.mean(x, axis=-1, keepdims=True)
    var = jnp.mean(jnp.square(x - mu), axis=-1, keepdims=True)
    return (x - mu) * lax.rsqrt(var + eps) * g + b


def _bf(t):
    return t.astype(jnp.bfloat16).astype(jnp.float32)


def _fp(t):
    return t.astype(jnp.float32)


def _lstm_ref(x, w_ih, w_hh, b_ih, b_hh):
    B, S, H = x.shape
    gates_x = x @ w_ih.T + b_ih + b_hh                 # hoisted, f32 (matches kernel)

    def step(carry, gx_t):
        h, c = carry
        gates = gx_t + _bf(h) @ w_hh.T                 # h rounded to bf16 like the MXU path
        i, f, g, o = jnp.split(gates, 4, axis=-1)
        c = jax.nn.sigmoid(f) * c + jax.nn.sigmoid(i) * jnp.tanh(g)
        h = jax.nn.sigmoid(o) * jnp.tanh(c)
        return (h, c), h

    init = (jnp.zeros((B, H), jnp.float32), jnp.zeros((B, H), jnp.float32))
    _, hs = lax.scan(step, init, jnp.transpose(gates_x, (1, 0, 2)))
    return jnp.transpose(hs, (1, 0, 2))


def _reference(ids, params, cfg):
    B, S = ids.shape
    H, heads = cfg["hidden"], cfg["heads"]
    dh = H // heads
    p = params

    emb = (jnp.take(_fp(p["word_emb"]), ids, axis=0)
           + _fp(p["pos_emb"][:S])[None, :, :]
           + _fp(p["type_emb"][0])[None, None, :])
    x = _bf(_ln_ref(emb, _fp(p["emb_ln_g"]), _fp(p["emb_ln_b"])))

    for layer in p["layers"]:
        qkv = _bf(x @ _fp(layer["wqkv"]) + _fp(layer["bqkv"]))
        q, k, v = jnp.split(qkv, 3, axis=-1)
        qh = q.reshape(B, S, heads, dh).transpose(0, 2, 1, 3)
        kh = k.reshape(B, S, heads, dh).transpose(0, 2, 1, 3)
        vh = v.reshape(B, S, heads, dh).transpose(0, 2, 1, 3)
        s = jnp.einsum("bhqd,bhkd->bhqk", qh, kh) / math.sqrt(dh)
        prob = _bf(jax.nn.softmax(s, axis=-1))
        attn = _bf(jnp.einsum("bhqk,bhkd->bhqd", prob, vh)
                   .transpose(0, 2, 1, 3).reshape(B, S, H))
        attn_out = attn @ _fp(layer["wo"]) + _fp(layer["bo"])
        x = _bf(_ln_ref(x + attn_out, _fp(layer["ln1_g"]), _fp(layer["ln1_b"])))
        ffn = _bf(jax.nn.gelu(x @ _fp(layer["wi"]) + _fp(layer["bi"]), approximate=True))
        ffn_out = ffn @ _fp(layer["wo2"]) + _fp(layer["bo2"])
        x = _bf(_ln_ref(x + ffn_out, _fp(layer["ln2_g"]), _fp(layer["ln2_b"])))

    lstm = p["lstm"]
    return _lstm_ref(x, _fp(lstm["w_ih"]), _fp(lstm["w_hh"]),
                     _fp(lstm["b_ih"]), _fp(lstm["b_hh"]))


# --------------------------------------------------------------------------------------
# Params (matmul weights stored in bf16 in HBM; biases / LN params / embeddings in f32)
# --------------------------------------------------------------------------------------
def init_params(key, cfg):
    H, I, L = cfg["hidden"], cfg["intermediate"], cfg["layers"]
    keys = iter(jax.random.split(key, 128))

    def rnd(shape, scale=0.02, dtype=jnp.float32):
        return (jax.random.normal(next(keys), shape, jnp.float32) * scale).astype(dtype)

    W = ACT_DTYPE
    params = {
        "word_emb": rnd((cfg["vocab"], H)),
        "pos_emb": rnd((cfg["max_pos"], H)),
        "type_emb": rnd((2, H)),
        "emb_ln_g": jnp.ones((H,), jnp.float32),
        "emb_ln_b": jnp.zeros((H,), jnp.float32),
        "layers": [],
        "lstm": {
            "w_ih": rnd((4 * H, H), 0.05, W),
            "w_hh": rnd((4 * H, H), 0.05, W),
            "b_ih": rnd((4 * H,), 0.02),
            "b_hh": rnd((4 * H,), 0.02),
        },
    }
    for _ in range(L):
        params["layers"].append({
            "wqkv": rnd((H, 3 * H), dtype=W), "bqkv": rnd((3 * H,)),
            "wo": rnd((H, H), dtype=W), "bo": rnd((H,)),
            "ln1_g": jnp.ones((H,), jnp.float32), "ln1_b": jnp.zeros((H,), jnp.float32),
            "wi": rnd((H, I), dtype=W), "bi": rnd((I,)),
            "wo2": rnd((I, H), dtype=W), "bo2": rnd((H,)),
            "ln2_g": jnp.ones((H,), jnp.float32), "ln2_b": jnp.zeros((H,), jnp.float32),
        })
    return params


# --------------------------------------------------------------------------------------
if __name__ == "__main__":
    cfg = dict(vocab=128, max_pos=64, hidden=128, heads=2, intermediate=256, layers=2)
    B, S = 2, 8

    key = jax.random.PRNGKey(0)
    kp, ki = jax.random.split(key)
    params = init_params(kp, cfg)
    ids = jax.random.randint(ki, (B, S), 0, cfg["vocab"], dtype=jnp.int32)

    out = bert_lstm_forward(ids, params, cfg)
    out = jax.block_until_ready(out)
    assert out.shape == (B, S, cfg["hidden"])
    assert out.dtype == jnp.float32

    ref = _reference(ids, params, cfg)
    max_err = float(jnp.max(jnp.abs(out - ref)))
    assert jnp.allclose(out, ref, atol=1e-2, rtol=1e-2), f"mismatch vs reference ({max_err})"

    print("KERNEL_OK")
</pallas_src>

<mosaic_0001>
module attributes {stable_mosaic.version = 11 : i64} {
  func.func @ln_kernel(%arg0: i32, %arg1: memref<16x128xf32, #tpu.memory_space<vmem>>, %arg2: memref<1x128xf32, #tpu.memory_space<vmem>>, %arg3: memref<1x128xf32, #tpu.memory_space<vmem>>, %arg4: memref<16x128xbf16, #tpu.memory_space<vmem>>) attributes {dimension_semantics = [#tpu.dimension_semantics<parallel>], iteration_bounds = array<i64: 1>, scalar_prefetch = 0 : i64, scratch_operands = 0 : i64, tpu.core_type = #tpu.core_type<tc>, window_params = [{transform_indices = @transform_0, window_bounds = array<i64: 16, 128>}, {pipeline_mode = #tpu.pipeline_mode<synchronous>, transform_indices = @transform_1, window_bounds = array<i64: 1, 128>}, {pipeline_mode = #tpu.pipeline_mode<synchronous>, transform_indices = @transform_2, window_bounds = array<i64: 1, 128>}, {transform_indices = @transform_3, window_bounds = array<i64: 16, 128>}]} {
    %c0 = arith.constant 0 : index
    %c0_0 = arith.constant 0 : index
    %0 = vector.load %arg1[%c0, %c0_0] : memref<16x128xf32, #tpu.memory_space<vmem>>, vector<16x128xf32>
    %cst = arith.constant dense<0.000000e+00> : vector<16xf32>
    %1 = vector.multi_reduction <add>, %0, %cst [1] : vector<16x128xf32> to vector<16xf32>
    %2 = vector.shape_cast %1 : vector<16xf32> to vector<16x1xf32>
    %cst_1 = arith.constant 1.280000e+02 : f32
    %3 = vector.broadcast %cst_1 : f32 to vector<16x1xf32>
    %4 = arith.divf %2, %3 : vector<16x1xf32>
    %5 = vector.broadcast %4 : vector<16x1xf32> to vector<16x128xf32>
    %6 = arith.subf %0, %5 : vector<16x128xf32>
    %7 = arith.mulf %6, %6 : vector<16x128xf32>
    %cst_2 = arith.constant dense<0.000000e+00> : vector<16xf32>
    %8 = vector.multi_reduction <add>, %7, %cst_2 [1] : vector<16x128xf32> to vector<16xf32>
    %9 = vector.shape_cast %8 : vector<16xf32> to vector<16x1xf32>
    %cst_3 = arith.constant 1.280000e+02 : f32
    %10 = vector.broadcast %cst_3 : f32 to vector<16x1xf32>
    %11 = arith.divf %9, %10 : vector<16x1xf32>
    %12 = vector.broadcast %4 : vector<16x1xf32> to vector<16x128xf32>
    %13 = arith.subf %0, %12 : vector<16x128xf32>
    %cst_4 = arith.constant 9.99999996E-13 : f32
    %14 = vector.broadcast %cst_4 : f32 to vector<16x1xf32>
    %15 = arith.addf %11, %14 : vector<16x1xf32>
    %16 = math.rsqrt %15 : vector<16x1xf32>
    %17 = vector.broadcast %16 : vector<16x1xf32> to vector<16x128xf32>
    %18 = arith.mulf %13, %17 : vector<16x128xf32>
    %c0_5 = arith.constant 0 : index
    %c0_6 = arith.constant 0 : index
    %19 = vector.load %arg2[%c0_5, %c0_6] : memref<1x128xf32, #tpu.memory_space<vmem>>, vector<1x128xf32>
    %20 = vector.broadcast %19 : vector<1x128xf32> to vector<16x128xf32>
    %21 = arith.mulf %18, %20 : vector<16x128xf32>
    %c0_7 = arith.constant 0 : index
    %c0_8 = arith.constant 0 : index
    %22 = vector.load %arg3[%c0_7, %c0_8] : memref<1x128xf32, #tpu.memory_space<vmem>>, vector<1x128xf32>
    %23 = vector.broadcast %22 : vector<1x128xf32> to vector<16x128xf32>
    %24 = arith.addf %21, %23 : vector<16x128xf32>
    %25 = arith.truncf %24 : vector<16x128xf32> to vector<16x128xbf16>
    %c0_9 = arith.constant 0 : index
    %c0_10 = arith.constant 0 : index
    %26 = vector.load %arg4[%c0_9, %c0_10] : memref<16x128xbf16, #tpu.memory_space<vmem>>, vector<16x128xbf16>
    tpu.vector_store %arg4[%c0_9, %c0_10], %25 {strides = array<i32>} : memref<16x128xbf16, #tpu.memory_space<vmem>>, vector<16x128xbf16>,
    return
  }
  func.func @transform_0(%arg0: i32) -> (i32, i32) {
    %c0_i32 = arith.constant 0 : i32
    %c0_i32_0 = arith.constant 0 : i32
    return %arg0, %c0_i32 : i32, i32
  }
  func.func @transform_1(%arg0: i32) -> (i32, i32) {
    %c0_i32 = arith.constant 0 : i32
    %c0_i32_0 = arith.constant 0 : i32
    %c0_i32_1 = arith.constant 0 : i32
    return %c0_i32, %c0_i32_0 : i32, i32
  }
  func.func @transform_2(%arg0: i32) -> (i32, i32) {
    %c0_i32 = arith.constant 0 : i32
    %c0_i32_0 = arith.constant 0 : i32
    %c0_i32_1 = arith.constant 0 : i32
    return %c0_i32, %c0_i32_0 : i32, i32
  }
  func.func @transform_3(%arg0: i32) -> (i32, i32) {
    %c0_i32 = arith.constant 0 : i32
    %c0_i32_0 = arith.constant 0 : i32
    return %arg0, %c0_i32 : i32, i32
  }
}

</mosaic_0001>

<llo_original>
// kernel: tpu_custom_call.1
$region0: #{tpu_custom_call.1}
  #allocation0 [shape = 'u32[]', space=smem, size = 0x4, offset = 0x4, fixed_abs, tag = 'smem constant byte address 0x4 - core index']
  #allocation1 [shape = 'u32[144,128]{1,0:T(1,128)}', space=vmem, size = 0x12000, scoped, tag = 'internal scratch']
  %s0 = inlined_call_operand.hbm [shape: f32[16,128], index: 0, kind: input, shape index: {}]
  %s1 = inlined_call_operand.vmem [shape: f32[1,128], index: 1, kind: input, shape index: {}]
  %s2 = inlined_call_operand.vmem [shape: f32[1,128], index: 2, kind: input, shape index: {}]
  %s3 = inlined_call_operand.hbm [shape: bf16[16,128], index: 3, kind: output, shape index: {}]
  %s4 = sld [smem:[#allocation0]]
  $region26: #{tpu_custom_call.1} parent=0
    _
  %s6 = ssub.s32 1, %s4
  %s7 = scalar_select 0, %s6, %s4
  $region1: #{tpu_custom_call.1} parent=0
    #allocation2 [shape = 'u8[8192]{0}', space=vmem, size = 0x2000, scoped, tag = 'input window, operand 0, single buffered']
    #allocation3 [shape = 's32[1]{0}', space=sflag, size = 0x4, scoped, tag = 'scoped memory for tpu_custom_call.1']
    #allocation4 [shape = 's32[1]{0}', space=sflag, size = 0x4, scoped, tag = 'scoped memory for tpu_custom_call.1']
    #allocation5 [shape = 'u8[4096]{0}', space=vmem, size = 0x1000, scoped, tag = 'output window, operand 0, single buffered']
    %8 = vsyncpa [#allocation3], 0
    %9 = vsyncpa [#allocation4], 0
    // Predicated region
    $region2: #{tpu_custom_call.1} parent=1 // pred_check
      _
    $region3: #{tpu_custom_call.1} parent=1 // pred_check_branch
      %11 = sbr.rel (0) target = $region5
    $region4: #{tpu_custom_call.1} parent=1 // pred_region
      %s13 = ssub.s32 256, 256
      %14 = vsyncadd [#allocation3], %s13
      %s15 = sshll.u32 [#allocation2], 4
      %s16 = int_to_ptr.vmem [resolvable:$true] %s15
      %21 = dma.hbm_to_vmem [thread:$0]  %s0, 256, %s16, [#allocation3], 128, 128, 8
    $region5: #{tpu_custom_call.1} parent=1 // pred_fallthru
      _
    // Predicated region
    $region6: #{tpu_custom_call.1} parent=1 // pred_check
      _
    $region7: #{tpu_custom_call.1} parent=1 // pred_check_branch
      %23 = sbr.rel (0) target = $region9
    $region8: #{tpu_custom_call.1} parent=1 // pred_region
      _
    $region9: #{tpu_custom_call.1} parent=1 // pred_fallthru
      _
    // Predicated region
    $region10: #{tpu_custom_call.1} parent=1 // pred_check
      _
    $region11: #{tpu_custom_call.1} parent=1 // pred_check_branch
      %25 = sbr.rel (0) target = $region13
    $region12: #{tpu_custom_call.1} parent=1 // pred_region
      _
    $region13: #{tpu_custom_call.1} parent=1 // pred_fallthru
      _
    // Predicated region
    $region14: #{tpu_custom_call.1} parent=1 // pred_check
      _
    $region15: #{tpu_custom_call.1} parent=1 // pred_check_branch
      %27 = sbr.rel (0) target = $region17
    $region16: #{tpu_custom_call.1} parent=1 // pred_region
      %28 = dma.done [#allocation3], 256
    $region17: #{tpu_custom_call.1} parent=1 // pred_fallthru
      _
    %v29 = vld [vmem:[#allocation2] sm:$0xff]
    %v30 = vld [vmem:[#allocation2 + $0x8] sm:$0xff]
    %31 = vadd.xlane.f32.xlu0 %v29
    %v32 = vpop.xlane.xlu0 %31
    %33 = vadd.xlane.f32.xlu0 %v30
    %v34 = vpop.xlane.xlu0 %33
    %v35 = vrcp.pop 128.0
    %v36 = vmul.f32 %v32, %v35
    %v37 = vmul.f32 %v34, %v35
    %v38 = vsub.f32 %v29, %v36
    %v39 = vsub.f32 %v30, %v37
    %v40 = vmul.f32 %v38, %v38
    %v41 = vmul.f32 %v39, %v39
    %42 = vadd.xlane.f32.xlu0 %v40
    %v43 = vpop.xlane.xlu0 %42
    %44 = vadd.xlane.f32.xlu0 %v41
    %v45 = vpop.xlane.xlu0 %44
    %v46 = vmul.f32 %v43, %v35
    %v47 = vmul.f32 %v45, %v35
    %v48 = vadd.f32 %v46, 1e-12
    %v49 = vadd.f32 %v47, 1e-12
    %v50 = vrsqrt.pop %v48
    %v51 = vrsqrt.pop %v49
    %v52 = vmul.f32 %v38, %v50
    %v53 = vmul.f32 %v39, %v51
    %v54 = vld [vmem:[%s1] sm:$0x1]
    %v56 = vlaneseq
    %v57 = vshrl.u32 %v56, 7
    %v58 = vsub.s32 0, %v57
    %v59 = vrot.slane %v54, %v58
    %v61 = vmul.f32 %v52, %v59
    %v62 = vmul.f32 %v53, %v59
    %v63 = vld [vmem:[%s2] sm:$0x1]
    %v65 = vlaneseq
    %v66 = vshrl.u32 %v65, 7
    %v67 = vsub.s32 0, %v66
    %v68 = vrot.slane %v63, %v67
    %v70 = vadd.f32 %v61, %v68
    %v71 = vadd.f32 %v62, %v68
    %v72 = vpack.c.bf16 %v71, %v70
    %v74 = vunpack.c.l.b16 %v72
    %v75 = vunpack.c.h.b16 %v72
    %v76 = vpack.c.b16 %v74, %v74
    %v77 = vpack.c.b16 %v75, %v75
    %80 = vst [vmem:[#allocation5] sm:$0xf] %v76
    %81 = vst [vmem:[#allocation5 + $0x4] sm:$0xf] %v77
    // Predicated region
    $region18: #{tpu_custom_call.1} parent=1 // pred_check
      _
    $region19: #{tpu_custom_call.1} parent=1 // pred_check_branch
      %83 = sbr.rel (0) target = $region21
    $region20: #{tpu_custom_call.1} parent=1 // pred_region
      %s85 = ssub.s32 128, 128
      %86 = vsyncadd [#allocation4], %s85
      %s87 = sshll.u32 [#allocation5], 4
      %s88 = int_to_ptr.vmem [resolvable:$true] %s87
      %93 = dma.vmem_to_hbm [thread:$0]  %s88, 128, %s3, [#allocation4], 64, 64, 4
    $region21: #{tpu_custom_call.1} parent=1 // pred_fallthru
      _
    // Predicated region
    $region22: #{tpu_custom_call.1} parent=1 // pred_check
      _
    $region23: #{tpu_custom_call.1} parent=1 // pred_check_branch
      %95 = sbr.rel (0) target = $region25
    $region24: #{tpu_custom_call.1} parent=1 // pred_region
      %96 = dma.done [#allocation4], 128
    $region25: #{tpu_custom_call.1} parent=1 // pred_fallthru
      _
    %97 = vsyncpa [#allocation3], 1
    %98 = vsyncpa [#allocation4], 1

</llo_original>
